<compile_context>
chip_gen: v5e
topology: v5e:2x2
jax: 0.10.0
libtpu: 0.0.40
codegen_flags: <defaults>
</compile_context>

<pallas_src>
import numpy as np
import jax
import jax.numpy as jnp
from jax.experimental import pallas as pl
from jax.experimental.pallas import tpu as pltpu

# ---- small deterministic configuration (inceptionAux_block = (4, 8)) ----
C_IN, C_OUT = 4, 8
N = 2
H = W = 14            # AvgPool2d(5, stride=3, ceil_mode=True): 14 -> 4, all windows full
POOL_OUT = 4
KPOOL, SPOOL = 5, 3
IN_FLAT = C_IN * H * W                     # 784
FEAT = C_OUT * POOL_OUT * POOL_OUT         # 128
HIDDEN = 1024
CLASSES = 10


# ------------------------------------------------------------------ fused kernel
def fused_aux_kernel(x_ref, m_ref, bc_ref, w1_ref, b1_ref, w2_ref, b2_ref, o_ref):
    """pool+1x1conv (as one matmul) + ReLU + fc1 + ReLU + fc2 + softmax(dim=0).

    x_ref : (N, C_IN*H*W)   flattened NCHW input
    m_ref : (C_IN*H*W, FEAT) combined pool+conv matrix (channel-major columns)
    bc_ref: (1, FEAT)        conv bias broadcast to channel-major feature layout
    w1_ref: (FEAT, HIDDEN)   fc1 weight, pre-transposed
    b1_ref: (1, HIDDEN)
    w2_ref: (HIDDEN, CLASSES) fc2 weight, pre-transposed
    b2_ref: (1, CLASSES)
    o_ref : (N, CLASSES)
    """
    # avgpool + 1x1 conv + bias + ReLU, already in torch's .view(-1, Cout*4*4) order
    feat = jnp.dot(x_ref[...], m_ref[...], preferred_element_type=jnp.float32) + bc_ref[...]
    feat = jnp.maximum(feat, 0.0)

    # fc1 + ReLU
    h = jnp.dot(feat, w1_ref[...], preferred_element_type=jnp.float32) + b1_ref[...]
    h = jnp.maximum(h, 0.0)
    # TODO(synk): Dropout(p=0.7) is treated as identity (eval-mode semantics).

    # fc2 + softmax over dim=0 (the batch dimension), exactly as in the PyTorch module
    logits = jnp.dot(h, w2_ref[...], preferred_element_type=jnp.float32) + b2_ref[...]
    m = jnp.max(logits, axis=0, keepdims=True)
    e = jnp.exp(logits - m)
    o_ref[...] = e / jnp.sum(e, axis=0, keepdims=True)


# ------------------------------------------------------------------ one-time param prep
def prepare_params(conv_w, conv_b, fc1_w, fc1_b, fc2_w, fc2_b):
    """Fold avgpool + 1x1 conv into one matrix; pre-transpose FC weights.

    Done ONCE (not on the per-forward path).  All 16 pooling windows are full
    (14 -> 4 with k=5, s=3, ceil_mode=True), so the 1/25 divisor is exact.
    """
    # Pooling matrix P: (H*W, 16), P[pixel, window] = 1/25 if pixel in window.
    P = np.zeros((H * W, POOL_OUT * POOL_OUT), dtype=np.float32)
    inv = 1.0 / float(KPOOL * KPOOL)
    for oh in range(POOL_OUT):
        for ow in range(POOL_OUT):
            q = oh * POOL_OUT + ow
            for kh in range(KPOOL):
                for kw in range(KPOOL):
                    P[(oh * SPOOL + kh) * W + (ow * SPOOL + kw), q] = inv

    w = conv_w[:, :, 0, 0]                                   # (C_OUT, C_IN)
    # M[ci*196 + p, co*16 + q] = P[p, q] * w[co, ci]  -> channel-major columns,
    # matching torch's x.view(-1, C_OUT*4*4) flatten order.
    M = jnp.einsum("pq,oc->cpoq", jnp.asarray(P), w).reshape(IN_FLAT, FEAT)
    bc = jnp.repeat(conv_b, POOL_OUT * POOL_OUT)[None, :]    # (1, FEAT)

    return (M.astype(jnp.float32), bc.astype(jnp.float32),
            jnp.transpose(fc1_w), fc1_b[None, :],
            jnp.transpose(fc2_w), fc2_b[None, :])


# ------------------------------------------------------------------ wrapper
@jax.jit
def inception_aux_forward(x, M, bc, w1t, b1, w2t, b2):
    n = x.shape[0]
    x_flat = x.reshape(n, IN_FLAT)           # pure reshape of contiguous NCHW (no transpose)
    return pl.pallas_call(
        fused_aux_kernel,
        out_shape=jax.ShapeDtypeStruct((n, CLASSES), jnp.float32),
        grid=(1,),
        in_specs=[
            pl.BlockSpec((n, IN_FLAT), lambda i: (0, 0)),
            pl.BlockSpec((IN_FLAT, FEAT), lambda i: (0, 0)),
            pl.BlockSpec((1, FEAT), lambda i: (0, 0)),
            pl.BlockSpec((FEAT, HIDDEN), lambda i: (0, 0)),
            pl.BlockSpec((1, HIDDEN), lambda i: (0, 0)),
            pl.BlockSpec((HIDDEN, CLASSES), lambda i: (0, 0)),
            pl.BlockSpec((1, CLASSES), lambda i: (0, 0)),
        ],
        out_specs=pl.BlockSpec((n, CLASSES), lambda i: (0, 0)),
        compiler_params=pltpu.CompilerParams(dimension_semantics=("arbitrary",)),
    )(x_flat, M, bc, w1t, b1, w2t, b2)


# ------------------------------------------------------------------ reference (plain JAX)
def reference(x, conv_w, conv_b, fc1_w, fc1_b, fc2_w, fc2_b):
    n = x.shape[0]
    pooled = jnp.stack(
        [jnp.stack(
            [x[:, :, oh * 3:oh * 3 + 5, ow * 3:ow * 3 + 5].mean(axis=(2, 3))
             for ow in range(POOL_OUT)], axis=-1)
         for oh in range(POOL_OUT)], axis=-2)                 # (N, C_IN, 4, 4)
    conv = jnp.einsum("oc,ncij->noij", conv_w[:, :, 0, 0], pooled) \
        + conv_b[None, :, None, None]
    conv = jnp.maximum(conv, 0.0)
    feat = conv.reshape(n, FEAT)
    h = jnp.maximum(feat @ fc1_w.T + fc1_b, 0.0)
    logits = h @ fc2_w.T + fc2_b
    return jax.nn.softmax(logits, axis=0)


# ------------------------------------------------------------------ main
if __name__ == "__main__":
    key = jax.random.PRNGKey(0)
    kx, k1, k2, k3, k4, k5, k6 = jax.random.split(key, 7)

    x = jax.random.normal(kx, (N, C_IN, H, W), dtype=jnp.float32)

    conv_w = 0.1 * jax.random.normal(k1, (C_OUT, C_IN, 1, 1), dtype=jnp.float32)
    conv_b = 0.1 * jax.random.normal(k2, (C_OUT,), dtype=jnp.float32)
    fc1_w = 0.05 * jax.random.normal(k3, (HIDDEN, FEAT), dtype=jnp.float32)
    fc1_b = 0.05 * jax.random.normal(k4, (HIDDEN,), dtype=jnp.float32)
    fc2_w = 0.05 * jax.random.normal(k5, (CLASSES, HIDDEN), dtype=jnp.float32)
    fc2_b = 0.05 * jax.random.normal(k6, (CLASSES,), dtype=jnp.float32)

    # one-time weight preparation (folded pool+conv matrix, pre-transposed FC weights)
    prepped = prepare_params(conv_w, conv_b, fc1_w, fc1_b, fc2_w, fc2_b)
    prepped = jax.tree_util.tree_map(jax.block_until_ready, prepped)

    out = inception_aux_forward(x, *prepped)
    out = jax.block_until_ready(out)

    ref = reference(x, conv_w, conv_b, fc1_w, fc1_b, fc2_w, fc2_b)
    assert out.shape == (N, CLASSES)
    assert jnp.allclose(out, ref, rtol=1e-4, atol=1e-5), "mismatch vs plain-JAX reference"
    # softmax over dim=0 => each column sums to 1
    assert jnp.allclose(out.sum(axis=0), jnp.ones((CLASSES,)), atol=1e-5)

    print("KERNEL_OK")
</pallas_src>

<mosaic_0001>
module attributes {stable_mosaic.version = 11 : i64} {
  func.func @fused_aux_kernel(%arg0: i32, %arg1: memref<2x784xf32, #tpu.memory_space<vmem>>, %arg2: memref<784x128xf32, #tpu.memory_space<vmem>>, %arg3: memref<1x128xf32, #tpu.memory_space<vmem>>, %arg4: memref<128x1024xf32, #tpu.memory_space<vmem>>, %arg5: memref<1x1024xf32, #tpu.memory_space<vmem>>, %arg6: memref<1024x10xf32, #tpu.memory_space<vmem>>, %arg7: memref<1x10xf32, #tpu.memory_space<vmem>>, %arg8: memref<2x10xf32, #tpu.memory_space<vmem>>) attributes {dimension_semantics = [#tpu.dimension_semantics<arbitrary>], iteration_bounds = array<i64: 1>, scalar_prefetch = 0 : i64, scratch_operands = 0 : i64, tpu.core_type = #tpu.core_type<tc>, window_params = [{pipeline_mode = #tpu.pipeline_mode<synchronous>, transform_indices = @transform_0, window_bounds = array<i64: 2, 784>}, {pipeline_mode = #tpu.pipeline_mode<synchronous>, transform_indices = @transform_1, window_bounds = array<i64: 784, 128>}, {pipeline_mode = #tpu.pipeline_mode<synchronous>, transform_indices = @transform_2, window_bounds = array<i64: 1, 128>}, {pipeline_mode = #tpu.pipeline_mode<synchronous>, transform_indices = @transform_3, window_bounds = array<i64: 128, 1024>}, {pipeline_mode = #tpu.pipeline_mode<synchronous>, transform_indices = @transform_4, window_bounds = array<i64: 1, 1024>}, {pipeline_mode = #tpu.pipeline_mode<synchronous>, transform_indices = @transform_5, window_bounds = array<i64: 1024, 10>}, {pipeline_mode = #tpu.pipeline_mode<synchronous>, transform_indices = @transform_6, window_bounds = array<i64: 1, 10>}, {pipeline_mode = #tpu.pipeline_mode<synchronous>, transform_indices = @transform_7, window_bounds = array<i64: 2, 10>}]} {
    %c0 = arith.constant 0 : index
    %c0_0 = arith.constant 0 : index
    %0 = vector.load %arg1[%c0, %c0_0] : memref<2x784xf32, #tpu.memory_space<vmem>>, vector<2x784xf32>
    %c0_1 = arith.constant 0 : index
    %c0_2 = arith.constant 0 : index
    %1 = vector.load %arg2[%c0_1, %c0_2] : memref<784x128xf32, #tpu.memory_space<vmem>>, vector<784x128xf32>
    %cst = arith.constant dense<0.000000e+00> : vector<2x128xf32>
    %2 = tpu.matmul %0, %1, %cst {dimension_numbers = #tpu.dot_dimension_numbers<[1], [0], [0], [1], [0, 0, 1, 1], [], []>} : vector<2x784xf32>, vector<784x128xf32>, vector<2x128xf32> -> vector<2x128xf32>
    %c0_3 = arith.constant 0 : index
    %c0_4 = arith.constant 0 : index
    %3 = vector.load %arg3[%c0_3, %c0_4] : memref<1x128xf32, #tpu.memory_space<vmem>>, vector<1x128xf32>
    %4 = vector.broadcast %3 : vector<1x128xf32> to vector<2x128xf32>
    %5 = arith.addf %2, %4 : vector<2x128xf32>
    %cst_5 = arith.constant 0.000000e+00 : f32
    %6 = vector.broadcast %cst_5 : f32 to vector<2x128xf32>
    %7 = arith.maximumf %5, %6 : vector<2x128xf32>
    %c0_6 = arith.constant 0 : index
    %c0_7 = arith.constant 0 : index
    %8 = vector.load %arg4[%c0_6, %c0_7] : memref<128x1024xf32, #tpu.memory_space<vmem>>, vector<128x1024xf32>
    %cst_8 = arith.constant dense<0.000000e+00> : vector<2x1024xf32>
    %9 = tpu.matmul %7, %8, %cst_8 {dimension_numbers = #tpu.dot_dimension_numbers<[1], [0], [0], [1], [0, 0, 1, 1], [], []>} : vector<2x128xf32>, vector<128x1024xf32>, vector<2x1024xf32> -> vector<2x1024xf32>
    %c0_9 = arith.constant 0 : index
    %c0_10 = arith.constant 0 : index
    %10 = vector.load %arg5[%c0_9, %c0_10] : memref<1x1024xf32, #tpu.memory_space<vmem>>, vector<1x1024xf32>
    %11 = vector.broadcast %10 : vector<1x1024xf32> to vector<2x1024xf32>
    %12 = arith.addf %9, %11 : vector<2x1024xf32>
    %cst_11 = arith.constant 0.000000e+00 : f32
    %13 = vector.broadcast %cst_11 : f32 to vector<2x1024xf32>
    %14 = arith.maximumf %12, %13 : vector<2x1024xf32>
    %c0_12 = arith.constant 0 : index
    %c0_13 = arith.constant 0 : index
    %15 = vector.load %arg6[%c0_12, %c0_13] : memref<1024x10xf32, #tpu.memory_space<vmem>>, vector<1024x10xf32>
    %cst_14 = arith.constant dense<0.000000e+00> : vector<2x10xf32>
    %16 = tpu.matmul %14, %15, %cst_14 {dimension_numbers = #tpu.dot_dimension_numbers<[1], [0], [0], [1], [0, 0, 1, 1], [], []>} : vector<2x1024xf32>, vector<1024x10xf32>, vector<2x10xf32> -> vector<2x10xf32>
    %c0_15 = arith.constant 0 : index
    %c0_16 = arith.constant 0 : index
    %17 = vector.load %arg7[%c0_15, %c0_16] : memref<1x10xf32, #tpu.memory_space<vmem>>, vector<1x10xf32>
    %18 = vector.broadcast %17 : vector<1x10xf32> to vector<2x10xf32>
    %19 = arith.addf %16, %18 : vector<2x10xf32>
    %cst_17 = arith.constant dense<0xFF800000> : vector<10xf32>
    %20 = vector.multi_reduction <maximumf>, %19, %cst_17 [0] : vector<2x10xf32> to vector<10xf32>
    %21 = vector.shape_cast %20 : vector<10xf32> to vector<1x10xf32>
    %22 = vector.broadcast %21 : vector<1x10xf32> to vector<2x10xf32>
    %23 = arith.subf %19, %22 : vector<2x10xf32>
    %24 = math.exp %23 : vector<2x10xf32>
    %cst_18 = arith.constant dense<0.000000e+00> : vector<10xf32>
    %25 = vector.multi_reduction <add>, %24, %cst_18 [0] : vector<2x10xf32> to vector<10xf32>
    %26 = vector.shape_cast %25 : vector<10xf32> to vector<1x10xf32>
    %27 = vector.broadcast %26 : vector<1x10xf32> to vector<2x10xf32>
    %28 = arith.divf %24, %27 : vector<2x10xf32>
    %c0_19 = arith.constant 0 : index
    %c0_20 = arith.constant 0 : index
    %29 = vector.load %arg8[%c0_19, %c0_20] : memref<2x10xf32, #tpu.memory_space<vmem>>, vector<2x10xf32>
    tpu.vector_store %arg8[%c0_19, %c0_20], %28 {strides = array<i32>} : memref<2x10xf32, #tpu.memory_space<vmem>>, vector<2x10xf32>,
    return
  }
  func.func @transform_0(%arg0: i32) -> (i32, i32) {
    %c0_i32 = arith.constant 0 : i32
    %c0_i32_0 = arith.constant 0 : i32
    %c0_i32_1 = arith.constant 0 : i32
    return %c0_i32, %c0_i32_0 : i32, i32
  }
  func.func @transform_1(%arg0: i32) -> (i32, i32) {
    %c0_i32 = arith.constant 0 : i32
    %c0_i32_0 = arith.constant 0 : i32
    %c0_i32_1 = arith.constant 0 : i32
    return %c0_i32, %c0_i32_0 : i32, i32
  }
  func.func @transform_2(%arg0: i32) -> (i32, i32) {
    %c0_i32 = arith.constant 0 : i32
    %c0_i32_0 = arith.constant 0 : i32
    %c0_i32_1 = arith.constant 0 : i32
    return %c0_i32, %c0_i32_0 : i32, i32
  }
  func.func @transform_3(%arg0: i32) -> (i32, i32) {
    %c0_i32 = arith.constant 0 : i32
    %c0_i32_0 = arith.constant 0 : i32
    %c0_i32_1 = arith.constant 0 : i32
    return %c0_i32, %c0_i32_0 : i32, i32
  }
  func.func @transform_4(%arg0: i32) -> (i32, i32) {
    %c0_i32 = arith.constant 0 : i32
    %c0_i32_0 = arith.constant 0 : i32
    %c0_i32_1 = arith.constant 0 : i32
    return %c0_i32, %c0_i32_0 : i32, i32
  }
  func.func @transform_5(%arg0: i32) -> (i32, i32) {
    %c0_i32 = arith.constant 0 : i32
    %c0_i32_0 = arith.constant 0 : i32
    %c0_i32_1 = arith.constant 0 : i32
    return %c0_i32, %c0_i32_0 : i32, i32
  }
  func.func @transform_6(%arg0: i32) -> (i32, i32) {
    %c0_i32 = arith.constant 0 : i32
    %c0_i32_0 = arith.constant 0 : i32
    %c0_i32_1 = arith.constant 0 : i32
    return %c0_i32, %c0_i32_0 : i32, i32
  }
  func.func @transform_7(%arg0: i32) -> (i32, i32) {
    %c0_i32 = arith.constant 0 : i32
    %c0_i32_0 = arith.constant 0 : i32
    %c0_i32_1 = arith.constant 0 : i32
    return %c0_i32, %c0_i32_0 : i32, i32
  }
}

</mosaic_0001>

<llo_original>
// kernel: inception_aux_forward.1
$region0: #{inception_aux_forward.1}
  #allocation0 [shape = 'u32[]', space=smem, size = 0x4, offset = 0x4, fixed_abs, tag = 'smem constant byte address 0x4 - core index']
  #allocation1 [shape = 'u32[72,128]{1,0:T(1,128)}', space=vmem, size = 0x9000, scoped, tag = 'internal scratch']
  %s0 = inlined_call_operand.vmem [shape: f32[2,784], index: 0, kind: input, shape index: {}]
  %s1 = inlined_call_operand.hbm [shape: f32[784,128], index: 1, kind: input, shape index: {}]
  %s2 = inlined_call_operand.vmem [shape: f32[1,128], index: 2, kind: input, shape index: {}]
  %s3 = inlined_call_operand.vmem [shape: f32[128,1024], index: 3, kind: input, shape index: {}]
  %s4 = inlined_call_operand.vmem [shape: f32[1,1024], index: 4, kind: input, shape index: {}]
  %s5 = inlined_call_operand.vmem [shape: f32[1024,10], index: 5, kind: input, shape index: {}]
  %s6 = inlined_call_operand.vmem [shape: f32[1,10], index: 6, kind: input, shape index: {}]
  %s7 = inlined_call_operand.hbm [shape: f32[2,10], index: 7, kind: output, shape index: {}]
  %s8 = sld [smem:[#allocation0]]
  $region42: #{inception_aux_forward.1} parent=0
    _
  %s10 = ssub.s32 1, %s8
  %s11 = scalar_select 0, %s10, %s8
  $region1: #{inception_aux_forward.1} parent=0
    #allocation2 [shape = 'u8[401408]{0}', space=vmem, size = 0x62000, scoped, tag = 'input window, operand 1, single buffered']
    #allocation3 [shape = 's32[1]{0}', space=sflag, size = 0x4, scoped, tag = 'scoped memory for inception_aux_forward.1']
    #allocation4 [shape = 's32[1]{0}', space=sflag, size = 0x4, scoped, tag = 'scoped memory for inception_aux_forward.1']
    #allocation5 [shape = 'u8[1024]{0}', space=vmem, size = 0x400, scoped, tag = 'output window, operand 0, single buffered']
    %12 = vsyncpa [#allocation3], 0
    %13 = vsyncpa [#allocation4], 0
    // Predicated region
    $region2: #{inception_aux_forward.1} parent=1 // pred_check
      _
    $region3: #{inception_aux_forward.1} parent=1 // pred_check_branch
      %15 = sbr.rel (0) target = $region5
    $region4: #{inception_aux_forward.1} parent=1 // pred_region
      _
    $region5: #{inception_aux_forward.1} parent=1 // pred_fallthru
      _
    // Predicated region
    $region6: #{inception_aux_forward.1} parent=1 // pred_check
      _
    $region7: #{inception_aux_forward.1} parent=1 // pred_check_branch
      %17 = sbr.rel (0) target = $region9
    $region8: #{inception_aux_forward.1} parent=1 // pred_region
      %19 = vsyncadd [#allocation3], 0
      %s20 = sshll.u32 %s1, 4
      %s21 = int_to_ptr.hbm [resolvable:$true] %s20
      %s22 = sshll.u32 [#allocation2], 4
      %s23 = int_to_ptr.vmem [resolvable:$true] %s22
      %28 = dma.hbm_to_vmem [thread:$0]  %s21, 12544, %s23, [#allocation3], 128, 128, 8
    $region9: #{inception_aux_forward.1} parent=1 // pred_fallthru
      _
    // Predicated region
    $region10: #{inception_aux_forward.1} parent=1 // pred_check
      _
    $region11: #{inception_aux_forward.1} parent=1 // pred_check_branch
      %30 = sbr.rel (0) target = $region13
    $region12: #{inception_aux_forward.1} parent=1 // pred_region
      _
    $region13: #{inception_aux_forward.1} parent=1 // pred_fallthru
      _
    // Predicated region
    $region14: #{inception_aux_forward.1} parent=1 // pred_check
      _
    $region15: #{inception_aux_forward.1} parent=1 // pred_check_branch
      %32 = sbr.rel (0) target = $region17
    $region16: #{inception_aux_forward.1} parent=1 // pred_region
      _
    $region17: #{inception_aux_forward.1} parent=1 // pred_fallthru
      _
    // Predicated region
    $region18: #{inception_aux_forward.1} parent=1 // pred_check
      _
    $region19: #{inception_aux_forward.1} parent=1 // pred_check_branch
      %34 = sbr.rel (0) target = $region21
    $region20: #{inception_aux_forward.1} parent=1 // pred_region
      _
    $region21: #{inception_aux_forward.1} parent=1 // pred_fallthru
      _
    // Predicated region
    $region22: #{inception_aux_forward.1} parent=1 // pred_check
      _
    $region23: #{inception_aux_forward.1} parent=1 // pred_check_branch
      %36 = sbr.rel (0) target = $region25
    $region24: #{inception_aux_forward.1} parent=1 // pred_region
      _
    $region25: #{inception_aux_forward.1} parent=1 // pred_fallthru
      _
    // Predicated region
    $region26: #{inception_aux_forward.1} parent=1 // pred_check
      _
    $region27: #{inception_aux_forward.1} parent=1 // pred_check_branch
      %38 = sbr.rel (0) target = $region29
    $region28: #{inception_aux_forward.1} parent=1 // pred_region
      _
    $region29: #{inception_aux_forward.1} parent=1 // pred_fallthru
      _
    // Predicated region
    $region30: #{inception_aux_forward.1} parent=1 // pred_check
      _
    $region31: #{inception_aux_forward.1} parent=1 // pred_check_branch
      %40 = sbr.rel (0) target = $region33
    $region32: #{inception_aux_forward.1} parent=1 // pred_region
      %42 = dma.done [#allocation3], 12544
    $region33: #{inception_aux_forward.1} parent=1 // pred_fallthru
      _
    %v43 = vld [vmem:[%s0] sm:$0xff]
    %v44 = vld [vmem:[%s0 + $0x8] sm:$0x3f]
    %v45 = vld [vmem:[#allocation2] sm:$0xff]
    %v46 = vld [vmem:[#allocation2 + $0x8] sm:$0xff]
    %v47 = vld [vmem:[#allocation2 + $0x10] sm:$0xff]
    %v48 = vld [vmem:[#allocation2 + $0x18] sm:$0xff]
    %v49 = vld [vmem:[#allocation2 + $0x20] sm:$0xff]
    %v50 = vld [vmem:[#allocation2 + $0x28] sm:$0xff]
    %v51 = vld [vmem:[#allocation2 + $0x30] sm:$0xff]
    %v52 = vld [vmem:[#allocation2 + $0x38] sm:$0xff]
    %v53 = vld [vmem:[#allocation2 + $0x40] sm:$0xff]
    %v54 = vld [vmem:[#allocation2 + $0x48] sm:$0xff]
    %v55 = vld [vmem:[#allocation2 + $0x50] sm:$0xff]
    %v56 = vld [vmem:[#allocation2 + $0x58] sm:$0xff]
    %v57 = vld [vmem:[#allocation2 + $0x60] sm:$0xff]
    %v58 = vld [vmem:[#allocation2 + $0x68] sm:$0xff]
    %v59 = vld [vmem:[#allocation2 + $0x70] sm:$0xff]
    %v60 = vld [vmem:[#allocation2 + $0x78] sm:$0xff]
    %v61 = vld [vmem:[#allocation2 + $0x80] sm:$0xff]
    %v62 = vld [vmem:[#allocation2 + $0x88] sm:$0xff]
    %v63 = vld [vmem:[#allocation2 + $0x90] sm:$0xff]
    %v64 = vld [vmem:[#allocation2 + $0x98] sm:$0xff]
    %v65 = vld [vmem:[#allocation2 + $0xa0] sm:$0xff]
    %v66 = vld [vmem:[#allocation2 + $0xa8] sm:$0xff]
    %v67 = vld [vmem:[#allocation2 + $0xb0] sm:$0xff]
    %v68 = vld [vmem:[#allocation2 + $0xb8] sm:$0xff]
    %v69 = vld [vmem:[#allocation2 + $0xc0] sm:$0xff]
    %v70 = vld [vmem:[#allocation2 + $0xc8] sm:$0xff]
    %v71 = vld [vmem:[#allocation2 + $0xd0] sm:$0xff]
    %v72 = vld [vmem:[#allocation2 + $0xd8] sm:$0xff]
    %v73 = vld [vmem:[#allocation2 + $0xe0] sm:$0xff]
    %v74 = vld [vmem:[#allocation2 + $0xe8] sm:$0xff]
    %v75 = vld [vmem:[#allocation2 + $0xf0] sm:$0xff]
    %v76 = vld [vmem:[#allocation2 + $0xf8] sm:$0xff]
    %v77 = vld [vmem:[#allocation2 + $0x100] sm:$0xff]
    %v78 = vld [vmem:[#allocation2 + $0x108] sm:$0xff]
    %v79 = vld [vmem:[#allocation2 + $0x110] sm:$0xff]
    %v80 = vld [vmem:[#allocation2 + $0x118] sm:$0xff]
    %v81 = vld [vmem:[#allocation2 + $0x120] sm:$0xff]
    %v82 = vld [vmem:[#allocation2 + $0x128] sm:$0xff]
    %v83 = vld [vmem:[#allocation2 + $0x130] sm:$0xff]
    %v84 = vld [vmem:[#allocation2 + $0x138] sm:$0xff]
    %v85 = vld [vmem:[#allocation2 + $0x140] sm:$0xff]
    %v86 = vld [vmem:[#allocation2 + $0x148] sm:$0xff]
    %v87 = vld [vmem:[#allocation2 + $0x150] sm:$0xff]
    %v88 = vld [vmem:[#allocation2 + $0x158] sm:$0xff]
    %v89 = vld [vmem:[#allocation2 + $0x160] sm:$0xff]
    %v90 = vld [vmem:[#allocation2 + $0x168] sm:$0xff]
    %v91 = vld [vmem:[#allocation2 + $0x170] sm:$0xff]
    %v92 = vld [vmem:[#allocation2 + $0x178] sm:$0xff]
    %v93 = vld [vmem:[#allocation2 + $0x180] sm:$0xff]
    %v94 = vld [vmem:[#allocation2 + $0x188] sm:$0xff]
    %v95 = vld [vmem:[#allocation2 + $0x190] sm:$0xff]
    %v96 = vld [vmem:[#allocation2 + $0x198] sm:$0xff]
    %v97 = vld [vmem:[#allocation2 + $0x1a0] sm:$0xff]
    %v98 = vld [vmem:[#allocation2 + $0x1a8] sm:$0xff]
    %v99 = vld [vmem:[#allocation2 + $0x1b0] sm:$0xff]
    %v100 = vld [vmem:[#allocation2 + $0x1b8] sm:$0xff]
    %v101 = vld [vmem:[#allocation2 + $0x1c0] sm:$0xff]
    %v102 = vld [vmem:[#allocation2 + $0x1c8] sm:$0xff]
    %v103 = vld [vmem:[#allocation2 + $0x1d0] sm:$0xff]
    %v104 = vld [vmem:[#allocation2 + $0x1d8] sm:$0xff]
    %v105 = vld [vmem:[#allocation2 + $0x1e0] sm:$0xff]
    %v106 = vld [vmem:[#allocation2 + $0x1e8] sm:$0xff]
    %v107 = vld [vmem:[#allocation2 + $0x1f0] sm:$0xff]
    %v108 = vld [vmem:[#allocation2 + $0x1f8] sm:$0xff]
    %v109 = vld [vmem:[#allocation2 + $0x200] sm:$0xff]
    %v110 = vld [vmem:[#allocation2 + $0x208] sm:$0xff]
    %v111 = vld [vmem:[#allocation2 + $0x210] sm:$0xff]
    %v112 = vld [vmem:[#allocation2 + $0x218] sm:$0xff]
    %v113 = vld [vmem:[#allocation2 + $0x220] sm:$0xff]
    %v114 = vld [vmem:[#allocation2 + $0x228] sm:$0xff]
    %v115 = vld [vmem:[#allocation2 + $0x230] sm:$0xff]
    %v116 = vld [vmem:[#allocation2 + $0x238] sm:$0xff]
    %v117 = vld [vmem:[#allocation2 + $0x240] sm:$0xff]
    %v118 = vld [vmem:[#allocation2 + $0x248] sm:$0xff]
    %v119 = vld [vmem:[#allocation2 + $0x250] sm:$0xff]
    %v120 = vld [vmem:[#allocation2 + $0x258] sm:$0xff]
    %v121 = vld [vmem:[#allocation2 + $0x260] sm:$0xff]
    %v122 = vld [vmem:[#allocation2 + $0x268] sm:$0xff]
    %v123 = vld [vmem:[#allocation2 + $0x270] sm:$0xff]
    %v124 = vld [vmem:[#allocation2 + $0x278] sm:$0xff]
    %v125 = vld [vmem:[#allocation2 + $0x280] sm:$0xff]
    %v126 = vld [vmem:[#allocation2 + $0x288] sm:$0xff]
    %v127 = vld [vmem:[#allocation2 + $0x290] sm:$0xff]
    %v128 = vld [vmem:[#allocation2 + $0x298] sm:$0xff]
    %v129 = vld [vmem:[#allocation2 + $0x2a0] sm:$0xff]
    %v130 = vld [vmem:[#allocation2 + $0x2a8] sm:$0xff]
    %v131 = vld [vmem:[#allocation2 + $0x2b0] sm:$0xff]
    %v132 = vld [vmem:[#allocation2 + $0x2b8] sm:$0xff]
    %v133 = vld [vmem:[#allocation2 + $0x2c0] sm:$0xff]
    %v134 = vld [vmem:[#allocation2 + $0x2c8] sm:$0xff]
    %v135 = vld [vmem:[#allocation2 + $0x2d0] sm:$0xff]
    %v136 = vld [vmem:[#allocation2 + $0x2d8] sm:$0xff]
    %v137 = vld [vmem:[#allocation2 + $0x2e0] sm:$0xff]
    %v138 = vld [vmem:[#allocation2 + $0x2e8] sm:$0xff]
    %v139 = vld [vmem:[#allocation2 + $0x2f0] sm:$0xff]
    %v140 = vld [vmem:[#allocation2 + $0x2f8] sm:$0xff]
    %v141 = vld [vmem:[#allocation2 + $0x300] sm:$0xff]
    %v142 = vld [vmem:[#allocation2 + $0x308] sm:$0xff]
    %v143 = vld [vmem:[%s2] sm:$0x1]
    %v145 = vperm.slane %v143, 0
    %149 = vst [vmem:[#allocation1] ss:$4 sm:$0xff] %v43
    %s150 = scalar_lea.vmem [#allocation1], 32
    %151 = vst [vmem:[%s150] ss:$4 sm:$0xff] %v44
    %v152 = vld.sshfl [vmem:[#allocation1] sm:$0xff pattern:$0x73625140]
    %v153 = vld.sshfl [vmem:[#allocation1 + $0x8] sm:$0xff pattern:$0x73625140]
    %v154 = vld.sshfl [vmem:[#allocation1 + $0x10] sm:$0xff pattern:$0x73625140]
    %v155 = vld.sshfl [vmem:[#allocation1 + $0x18] sm:$0xff pattern:$0x73625140]
    %v156 = vld.sshfl [vmem:[#allocation1 + $0x20] sm:$0xff pattern:$0x73625140]
    %v157 = vld.sshfl [vmem:[#allocation1 + $0x28] sm:$0xff pattern:$0x73625140]
    %v158 = vld.sshfl [vmem:[#allocation1 + $0x30] sm:$0xff pattern:$0x73625140]
    %vm165 = vcmask 130048
    %v166 = vsel %vm165, %v158, 0
    %168 = vmatpush.msra.mxu0 %v60
    %169 = vmatpush.msra.mxu0 %v59
    %170 = vmatpush.msra.mxu0 %v58
    %171 = vmatpush.msra.mxu0 %v57
    %172 = vmatpush.msra.mxu0 %v56
    %173 = vmatpush.msra.mxu0 %v55
    %174 = vmatpush.msra.mxu0 %v54
    %175 = vmatpush.msra.mxu0 %v53
    %176 = vmatpush.msra.mxu0 %v52
    %177 = vmatpush.msra.mxu0 %v51
    %178 = vmatpush.msra.mxu0 %v50
    %179 = vmatpush.msra.mxu0 %v49
    %180 = vmatpush.msra.mxu0 %v48
    %181 = vmatpush.msra.mxu0 %v47
    %182 = vmatpush.msra.mxu0 %v46
    %183 = vmatpush.msra.mxu0 %v45
    %184 = vmatmul.f32.gmra.mxu0 %v152
    %v185 = vpop.f32.mrf.mxu0
    %v186 = vadd.f32 %v145, %v185
    %187 = vdwg.mxu0
    %188 = vmatpush.msra.mxu0 %v76
    %189 = vmatpush.msra.mxu0 %v75
    %190 = vmatpush.msra.mxu0 %v74
    %191 = vmatpush.msra.mxu0 %v73
    %192 = vmatpush.msra.mxu0 %v72
    %193 = vmatpush.msra.mxu0 %v71
    %194 = vmatpush.msra.mxu0 %v70
    %195 = vmatpush.msra.mxu0 %v69
    %196 = vmatpush.msra.mxu0 %v68
    %197 = vmatpush.msra.mxu0 %v67
    %198 = vmatpush.msra.mxu0 %v66
    %199 = vmatpush.msra.mxu0 %v65
    %200 = vmatpush.msra.mxu0 %v64
    %201 = vmatpush.msra.mxu0 %v63
    %202 = vmatpush.msra.mxu0 %v62
    %203 = vmatpush.msra.mxu0 %v61
    %204 = vmatmul.f32.gmra.mxu0 %v153
    %v205 = vpop.f32.mrf.mxu0
    %v206 = vadd.f32 %v186, %v205
    %207 = vdwg.mxu0
    %208 = vmatpush.msra.mxu0 %v92
    %209 = vmatpush.msra.mxu0 %v91
    %210 = vmatpush.msra.mxu0 %v90
    %211 = vmatpush.msra.mxu0 %v89
    %212 = vmatpush.msra.mxu0 %v88
    %213 = vmatpush.msra.mxu0 %v87
    %214 = vmatpush.msra.mxu0 %v86
    %215 = vmatpush.msra.mxu0 %v85
    %216 = vmatpush.msra.mxu0 %v84
    %217 = vmatpush.msra.mxu0 %v83
    %218 = vmatpush.msra.mxu0 %v82
    %219 = vmatpush.msra.mxu0 %v81
    %220 = vmatpush.msra.mxu0 %v80
    %221 = vmatpush.msra.mxu0 %v79
    %222 = vmatpush.msra.mxu0 %v78
    %223 = vmatpush.msra.mxu0 %v77
    %224 = vmatmul.f32.gmra.mxu0 %v154
    %v225 = vpop.f32.mrf.mxu0
    %v226 = vadd.f32 %v206, %v225
    %227 = vdwg.mxu0
    %228 = vmatpush.msra.mxu0 %v108
    %229 = vmatpush.msra.mxu0 %v107
    %230 = vmatpush.msra.mxu0 %v106
    %231 = vmatpush.msra.mxu0 %v105
    %232 = vmatpush.msra.mxu0 %v104
    %233 = vmatpush.msra.mxu0 %v103
    %234 = vmatpush.msra.mxu0 %v102
    %235 = vmatpush.msra.mxu0 %v101
    %236 = vmatpush.msra.mxu0 %v100
    %237 = vmatpush.msra.mxu0 %v99
    %238 = vmatpush.msra.mxu0 %v98
    %239 = vmatpush.msra.mxu0 %v97
    %240 = vmatpush.msra.mxu0 %v96
    %241 = vmatpush.msra.mxu0 %v95
    %242 = vmatpush.msra.mxu0 %v94
    %243 = vmatpush.msra.mxu0 %v93
    %244 = vmatmul.f32.gmra.mxu0 %v155
    %v245 = vpop.f32.mrf.mxu0
    %v246 = vadd.f32 %v226, %v245
    %247 = vdwg.mxu0
    %248 = vmatpush.msra.mxu0 %v124
    %249 = vmatpush.msra.mxu0 %v123
    %250 = vmatpush.msra.mxu0 %v122
    %251 = vmatpush.msra.mxu0 %v121
    %252 = vmatpush.msra.mxu0 %v120
    %253 = vmatpush.msra.mxu0 %v119
    %254 = vmatpush.msra.mxu0 %v118
    %255 = vmatpush.msra.mxu0 %v117
    %256 = vmatpush.msra.mxu0 %v116
    %257 = vmatpush.msra.mxu0 %v115
    %258 = vmatpush.msra.mxu0 %v114
    %259 = vmatpush.msra.mxu0 %v113
    %260 = vmatpush.msra.mxu0 %v112
    %261 = vmatpush.msra.mxu0 %v111
    %262 = vmatpush.msra.mxu0 %v110
    %263 = vmatpush.msra.mxu0 %v109
    %264 = vmatmul.f32.gmra.mxu0 %v156
    %v265 = vpop.f32.mrf.mxu0
    %v266 = vadd.f32 %v246, %v265
    %267 = vdwg.mxu0
    %268 = vmatpush.msra.mxu0 %v140
    %269 = vmatpush.msra.mxu0 %v139
    %270 = vmatpush.msra.mxu0 %v138
    %271 = vmatpush.msra.mxu0 %v137
    %272 = vmatpush.msra.mxu0 %v136
    %273 = vmatpush.msra.mxu0 %v135
    %274 = vmatpush.msra.mxu0 %v134
    %275 = vmatpush.msra.mxu0 %v133
    %276 = vmatpush.msra.mxu0 %v132
    %277 = vmatpush.msra.mxu0 %v131
    %278 = vmatpush.msra.mxu0 %v130
    %279 = vmatpush.msra.mxu0 %v129
    %280 = vmatpush.msra.mxu0 %v128
    %281 = vmatpush.msra.mxu0 %v127
    %282 = vmatpush.msra.mxu0 %v126
    %283 = vmatpush.msra.mxu0 %v125
    %284 = vmatmul.f32.gmra.mxu0 %v157
    %v285 = vpop.f32.mrf.mxu0
    %v286 = vadd.f32 %v266, %v285
    %287 = vdwg.mxu0
    %288 = vmatpush.msra.mxu0 0.0
    %289 = vmatpush.msra.mxu0 0.0
    %290 = vmatpush.msra.mxu0 0.0
    %291 = vmatpush.msra.mxu0 0.0
    %292 = vmatpush.msra.mxu0 0.0
    %293 = vmatpush.msra.mxu0 0.0
    %294 = vmatpush.msra.mxu0 0.0
    %295 = vmatpush.msra.mxu0 0.0
    %296 = vmatpush.msra.mxu0 0.0
    %297 = vmatpush.msra.mxu0 0.0
    %298 = vmatpush.msra.mxu0 0.0
    %299 = vmatpush.msra.mxu0 0.0
    %300 = vmatpush.msra.mxu0 0.0
    %301 = vmatpush.msra.mxu0 0.0
    %302 = vmatpush.msra.mxu0 %v142
    %303 = vmatpush.msra.mxu0 %v141
    %304 = vmatmul.f32.gmra.mxu0 %v166
    %v305 = vpop.f32.mrf.mxu0
    %v306 = vadd.f32 %v286, %v305
    %307 = vdwg.mxu0
    %v308 = vmax.f32 %v306, 0.0
    %v309 = vld [vmem:[%s3] sm:$0xff]
    %v310 = vld [vmem:[%s3 + $0x8] sm:$0xff]
    %v311 = vld [vmem:[%s3 + $0x10] sm:$0xff]
    %v312 = vld [vmem:[%s3 + $0x18] sm:$0xff]
    %v313 = vld [vmem:[%s3 + $0x20] sm:$0xff]
    %v314 = vld [vmem:[%s3 + $0x28] sm:$0xff]
    %v315 = vld [vmem:[%s3 + $0x30] sm:$0xff]
    %v316 = vld [vmem:[%s3 + $0x38] sm:$0xff]
    %v317 = vld [vmem:[%s3 + $0x40] sm:$0xff]
    %v318 = vld [vmem:[%s3 + $0x48] sm:$0xff]
    %v319 = vld [vmem:[%s3 + $0x50] sm:$0xff]
    %v320 = vld [vmem:[%s3 + $0x58] sm:$0xff]
    %v321 = vld [vmem:[%s3 + $0x60] sm:$0xff]
    %v322 = vld [vmem:[%s3 + $0x68] sm:$0xff]
    %v323 = vld [vmem:[%s3 + $0x70] sm:$0xff]
    %v324 = vld [vmem:[%s3 + $0x78] sm:$0xff]
    %v325 = vld [vmem:[%s3 + $0x80] sm:$0xff]
    %v326 = vld [vmem:[%s3 + $0x88] sm:$0xff]
    %v327 = vld [vmem:[%s3 + $0x90] sm:$0xff]
    %v328 = vld [vmem:[%s3 + $0x98] sm:$0xff]
    %v329 = vld [vmem:[%s3 + $0xa0] sm:$0xff]
    %v330 = vld [vmem:[%s3 + $0xa8] sm:$0xff]
    %v331 = vld [vmem:[%s3 + $0xb0] sm:$0xff]
    %v332 = vld [vmem:[%s3 + $0xb8] sm:$0xff]
    %v333 = vld [vmem:[%s3 + $0xc0] sm:$0xff]
    %v334 = vld [vmem:[%s3 + $0xc8] sm:$0xff]
    %v335 = vld [vmem:[%s3 + $0xd0] sm:$0xff]
    %v336 = vld [vmem:[%s3 + $0xd8] sm:$0xff]
    %v337 = vld [vmem:[%s3 + $0xe0] sm:$0xff]
    %v338 = vld [vmem:[%s3 + $0xe8] sm:$0xff]
    %v339 = vld [vmem:[%s3 + $0xf0] sm:$0xff]
    %v340 = vld [vmem:[%s3 + $0xf8] sm:$0xff]
    %v341 = vld [vmem:[%s3 + $0x100] sm:$0xff]
    %v342 = vld [vmem:[%s3 + $0x108] sm:$0xff]
    %v343 = vld [vmem:[%s3 + $0x110] sm:$0xff]
    %v344 = vld [vmem:[%s3 + $0x118] sm:$0xff]
    %v345 = vld [vmem:[%s3 + $0x120] sm:$0xff]
    %v346 = vld [vmem:[%s3 + $0x128] sm:$0xff]
    %v347 = vld [vmem:[%s3 + $0x130] sm:$0xff]
    %v348 = vld [vmem:[%s3 + $0x138] sm:$0xff]
    %v349 = vld [vmem:[%s3 + $0x140] sm:$0xff]
    %v350 = vld [vmem:[%s3 + $0x148] sm:$0xff]
    %v351 = vld [vmem:[%s3 + $0x150] sm:$0xff]
    %v352 = vld [vmem:[%s3 + $0x158] sm:$0xff]
    %v353 = vld [vmem:[%s3 + $0x160] sm:$0xff]
    %v354 = vld [vmem:[%s3 + $0x168] sm:$0xff]
    %v355 = vld [vmem:[%s3 + $0x170] sm:$0xff]
    %v356 = vld [vmem:[%s3 + $0x178] sm:$0xff]
    %v357 = vld [vmem:[%s3 + $0x180] sm:$0xff]
    %v358 = vld [vmem:[%s3 + $0x188] sm:$0xff]
    %v359 = vld [vmem:[%s3 + $0x190] sm:$0xff]
    %v360 = vld [vmem:[%s3 + $0x198] sm:$0xff]
    %v361 = vld [vmem:[%s3 + $0x1a0] sm:$0xff]
    %v362 = vld [vmem:[%s3 + $0x1a8] sm:$0xff]
    %v363 = vld [vmem:[%s3 + $0x1b0] sm:$0xff]
    %v364 = vld [vmem:[%s3 + $0x1b8] sm:$0xff]
    %v365 = vld [vmem:[%s3 + $0x1c0] sm:$0xff]
    %v366 = vld [vmem:[%s3 + $0x1c8] sm:$0xff]
    %v367 = vld [vmem:[%s3 + $0x1d0] sm:$0xff]
    %v368 = vld [vmem:[%s3 + $0x1d8] sm:$0xff]
    %v369 = vld [vmem:[%s3 + $0x1e0] sm:$0xff]
    %v370 = vld [vmem:[%s3 + $0x1e8] sm:$0xff]
    %v371 = vld [vmem:[%s3 + $0x1f0] sm:$0xff]
    %v372 = vld [vmem:[%s3 + $0x1f8] sm:$0xff]
    %v373 = vld [vmem:[%s3 + $0x200] sm:$0xff]
    %v374 = vld [vmem:[%s3 + $0x208] sm:$0xff]
    %v375 = vld [vmem:[%s3 + $0x210] sm:$0xff]
    %v376 = vld [vmem:[%s3 + $0x218] sm:$0xff]
    %v377 = vld [vmem:[%s3 + $0x220] sm:$0xff]
    %v378 = vld [vmem:[%s3 + $0x228] sm:$0xff]
    %v379 = vld [vmem:[%s3 + $0x230] sm:$0xff]
    %v380 = vld [vmem:[%s3 + $0x238] sm:$0xff]
    %v381 = vld [vmem:[%s3 + $0x240] sm:$0xff]
    %v382 = vld [vmem:[%s3 + $0x248] sm:$0xff]
    %v383 = vld [vmem:[%s3 + $0x250] sm:$0xff]
    %v384 = vld [vmem:[%s3 + $0x258] sm:$0xff]
    %v385 = vld [vmem:[%s3 + $0x260] sm:$0xff]
    %v386 = vld [vmem:[%s3 + $0x268] sm:$0xff]
    %v387 = vld [vmem:[%s3 + $0x270] sm:$0xff]
    %v388 = vld [vmem:[%s3 + $0x278] sm:$0xff]
    %v389 = vld [vmem:[%s3 + $0x280] sm:$0xff]
    %v390 = vld [vmem:[%s3 + $0x288] sm:$0xff]
    %v391 = vld [vmem:[%s3 + $0x290] sm:$0xff]
    %v392 = vld [vmem:[%s3 + $0x298] sm:$0xff]
    %v393 = vld [vmem:[%s3 + $0x2a0] sm:$0xff]
    %v394 = vld [vmem:[%s3 + $0x2a8] sm:$0xff]
    %v395 = vld [vmem:[%s3 + $0x2b0] sm:$0xff]
    %v396 = vld [vmem:[%s3 + $0x2b8] sm:$0xff]
    %v397 = vld [vmem:[%s3 + $0x2c0] sm:$0xff]
    %v398 = vld [vmem:[%s3 + $0x2c8] sm:$0xff]
    %v399 = vld [vmem:[%s3 + $0x2d0] sm:$0xff]
    %v400 = vld [vmem:[%s3 + $0x2d8] sm:$0xff]
    %v401 = vld [vmem:[%s3 + $0x2e0] sm:$0xff]
    %v402 = vld [vmem:[%s3 + $0x2e8] sm:$0xff]
    %v403 = vld [vmem:[%s3 + $0x2f0] sm:$0xff]
    %v404 = vld [vmem:[%s3 + $0x2f8] sm:$0xff]
    %v405 = vld [vmem:[%s3 + $0x300] sm:$0xff]
    %v406 = vld [vmem:[%s3 + $0x308] sm:$0xff]
    %v407 = vld [vmem:[%s3 + $0x310] sm:$0xff]
    %v408 = vld [vmem:[%s3 + $0x318] sm:$0xff]
    %v409 = vld [vmem:[%s3 + $0x320] sm:$0xff]
    %v410 = vld [vmem:[%s3 + $0x328] sm:$0xff]
    %v411 = vld [vmem:[%s3 + $0x330] sm:$0xff]
    %v412 = vld [vmem:[%s3 + $0x338] sm:$0xff]
    %v413 = vld [vmem:[%s3 + $0x340] sm:$0xff]
    %v414 = vld [vmem:[%s3 + $0x348] sm:$0xff]
    %v415 = vld [vmem:[%s3 + $0x350] sm:$0xff]
    %v416 = vld [vmem:[%s3 + $0x358] sm:$0xff]
    %v417 = vld [vmem:[%s3 + $0x360] sm:$0xff]
    %v418 = vld [vmem:[%s3 + $0x368] sm:$0xff]
    %v419 = vld [vmem:[%s3 + $0x370] sm:$0xff]
    %v420 = vld [vmem:[%s3 + $0x378] sm:$0xff]
    %v421 = vld [vmem:[%s3 + $0x380] sm:$0xff]
    %v422 = vld [vmem:[%s3 + $0x388] sm:$0xff]
    %v423 = vld [vmem:[%s3 + $0x390] sm:$0xff]
    %v424 = vld [vmem:[%s3 + $0x398] sm:$0xff]
    %v425 = vld [vmem:[%s3 + $0x3a0] sm:$0xff]
    %v426 = vld [vmem:[%s3 + $0x3a8] sm:$0xff]
    %v427 = vld [vmem:[%s3 + $0x3b0] sm:$0xff]
    %v428 = vld [vmem:[%s3 + $0x3b8] sm:$0xff]
    %v429 = vld [vmem:[%s3 + $0x3c0] sm:$0xff]
    %v430 = vld [vmem:[%s3 + $0x3c8] sm:$0xff]
    %v431 = vld [vmem:[%s3 + $0x3d0] sm:$0xff]
    %v432 = vld [vmem:[%s3 + $0x3d8] sm:$0xff]
    %v433 = vld [vmem:[%s3 + $0x3e0] sm:$0xff]
    %v434 = vld [vmem:[%s3 + $0x3e8] sm:$0xff]
    %v435 = vld [vmem:[%s3 + $0x3f0] sm:$0xff]
    %v436 = vld [vmem:[%s3 + $0x3f8] sm:$0xff]
    %v437 = vld [vmem:[%s4] sm:$0xff]
    %v439 = vperm.slane %v437, 0
    %v440 = vperm.slane %v437, 1
    %v441 = vperm.slane %v437, 2
    %v442 = vperm.slane %v437, 3
    %v443 = vperm.slane %v437, 4
    %v444 = vperm.slane %v437, 5
    %v445 = vperm.slane %v437, 6
    %v446 = vperm.slane %v437, 7
    %455 = vmatpush.msra.mxu0 %v429
    %456 = vmatpush.msra.mxu0 %v421
    %457 = vmatpush.msra.mxu0 %v413
    %458 = vmatpush.msra.mxu0 %v405
    %459 = vmatpush.msra.mxu0 %v397
    %460 = vmatpush.msra.mxu0 %v389
    %461 = vmatpush.msra.mxu0 %v381
    %462 = vmatpush.msra.mxu0 %v373
    %463 = vmatpush.msra.mxu0 %v365
    %464 = vmatpush.msra.mxu0 %v357
    %465 = vmatpush.msra.mxu0 %v349
    %466 = vmatpush.msra.mxu0 %v341
    %467 = vmatpush.msra.mxu0 %v333
    %468 = vmatpush.msra.mxu0 %v325
    %469 = vmatpush.msra.mxu0 %v317
    %470 = vmatpush.msra.mxu0 %v309
    %471 = vmatmul.f32.gmra.mxu0 %v308
    %v472 = vpop.f32.mrf.mxu0
    %v473 = vadd.f32 %v439, %v472
    %474 = vdwg.mxu0
    %475 = vmatpush.msra.mxu0 %v430
    %476 = vmatpush.msra.mxu0 %v422
    %477 = vmatpush.msra.mxu0 %v414
    %478 = vmatpush.msra.mxu0 %v406
    %479 = vmatpush.msra.mxu0 %v398
    %480 = vmatpush.msra.mxu0 %v390
    %481 = vmatpush.msra.mxu0 %v382
    %482 = vmatpush.msra.mxu0 %v374
    %483 = vmatpush.msra.mxu0 %v366
    %484 = vmatpush.msra.mxu0 %v358
    %485 = vmatpush.msra.mxu0 %v350
    %486 = vmatpush.msra.mxu0 %v342
    %487 = vmatpush.msra.mxu0 %v334
    %488 = vmatpush.msra.mxu0 %v326
    %489 = vmatpush.msra.mxu0 %v318
    %490 = vmatpush.msra.mxu0 %v310
    %491 = vmatmul.f32.gmra.mxu0 %v308
    %v492 = vpop.f32.mrf.mxu0
    %v493 = vadd.f32 %v440, %v492
    %494 = vdwg.mxu0
    %495 = vmatpush.msra.mxu0 %v431
    %496 = vmatpush.msra.mxu0 %v423
    %497 = vmatpush.msra.mxu0 %v415
    %498 = vmatpush.msra.mxu0 %v407
    %499 = vmatpush.msra.mxu0 %v399
    %500 = vmatpush.msra.mxu0 %v391
    %501 = vmatpush.msra.mxu0 %v383
    %502 = vmatpush.msra.mxu0 %v375
    %503 = vmatpush.msra.mxu0 %v367
    %504 = vmatpush.msra.mxu0 %v359
    %505 = vmatpush.msra.mxu0 %v351
    %506 = vmatpush.msra.mxu0 %v343
    %507 = vmatpush.msra.mxu0 %v335
    %508 = vmatpush.msra.mxu0 %v327
    %509 = vmatpush.msra.mxu0 %v319
    %510 = vmatpush.msra.mxu0 %v311
    %511 = vmatmul.f32.gmra.mxu0 %v308
    %v512 = vpop.f32.mrf.mxu0
    %v513 = vadd.f32 %v441, %v512
    %514 = vdwg.mxu0
    %515 = vmatpush.msra.mxu0 %v432
    %516 = vmatpush.msra.mxu0 %v424
    %517 = vmatpush.msra.mxu0 %v416
    %518 = vmatpush.msra.mxu0 %v408
    %519 = vmatpush.msra.mxu0 %v400
    %520 = vmatpush.msra.mxu0 %v392
    %521 = vmatpush.msra.mxu0 %v384
    %522 = vmatpush.msra.mxu0 %v376
    %523 = vmatpush.msra.mxu0 %v368
    %524 = vmatpush.msra.mxu0 %v360
    %525 = vmatpush.msra.mxu0 %v352
    %526 = vmatpush.msra.mxu0 %v344
    %527 = vmatpush.msra.mxu0 %v336
    %528 = vmatpush.msra.mxu0 %v328
    %529 = vmatpush.msra.mxu0 %v320
    %530 = vmatpush.msra.mxu0 %v312
    %531 = vmatmul.f32.gmra.mxu0 %v308
    %v532 = vpop.f32.mrf.mxu0
    %v533 = vadd.f32 %v442, %v532
    %534 = vdwg.mxu0
    %535 = vmatpush.msra.mxu0 %v433
    %536 = vmatpush.msra.mxu0 %v425
    %537 = vmatpush.msra.mxu0 %v417
    %538 = vmatpush.msra.mxu0 %v409
    %539 = vmatpush.msra.mxu0 %v401
    %540 = vmatpush.msra.mxu0 %v393
    %541 = vmatpush.msra.mxu0 %v385
    %542 = vmatpush.msra.mxu0 %v377
    %543 = vmatpush.msra.mxu0 %v369
    %544 = vmatpush.msra.mxu0 %v361
    %545 = vmatpush.msra.mxu0 %v353
    %546 = vmatpush.msra.mxu0 %v345
    %547 = vmatpush.msra.mxu0 %v337
    %548 = vmatpush.msra.mxu0 %v329
    %549 = vmatpush.msra.mxu0 %v321
    %550 = vmatpush.msra.mxu0 %v313
    %551 = vmatmul.f32.gmra.mxu0 %v308
    %v552 = vpop.f32.mrf.mxu0
    %v553 = vadd.f32 %v443, %v552
    %554 = vdwg.mxu0
    %555 = vmatpush.msra.mxu0 %v434
    %556 = vmatpush.msra.mxu0 %v426
    %557 = vmatpush.msra.mxu0 %v418
    %558 = vmatpush.msra.mxu0 %v410
    %559 = vmatpush.msra.mxu0 %v402
    %560 = vmatpush.msra.mxu0 %v394
    %561 = vmatpush.msra.mxu0 %v386
    %562 = vmatpush.msra.mxu0 %v378
    %563 = vmatpush.msra.mxu0 %v370
    %564 = vmatpush.msra.mxu0 %v362
    %565 = vmatpush.msra.mxu0 %v354
    %566 = vmatpush.msra.mxu0 %v346
    %567 = vmatpush.msra.mxu0 %v338
    %568 = vmatpush.msra.mxu0 %v330
    %569 = vmatpush.msra.mxu0 %v322
    %570 = vmatpush.msra.mxu0 %v314
    %571 = vmatmul.f32.gmra.mxu0 %v308
    %v572 = vpop.f32.mrf.mxu0
    %v573 = vadd.f32 %v444, %v572
    %574 = vdwg.mxu0
    %575 = vmatpush.msra.mxu0 %v435
    %576 = vmatpush.msra.mxu0 %v427
    %577 = vmatpush.msra.mxu0 %v419
    %578 = vmatpush.msra.mxu0 %v411
    %579 = vmatpush.msra.mxu0 %v403
    %580 = vmatpush.msra.mxu0 %v395
    %581 = vmatpush.msra.mxu0 %v387
    %582 = vmatpush.msra.mxu0 %v379
    %583 = vmatpush.msra.mxu0 %v371
    %584 = vmatpush.msra.mxu0 %v363
    %585 = vmatpush.msra.mxu0 %v355
    %586 = vmatpush.msra.mxu0 %v347
    %587 = vmatpush.msra.mxu0 %v339
    %588 = vmatpush.msra.mxu0 %v331
    %589 = vmatpush.msra.mxu0 %v323
    %590 = vmatpush.msra.mxu0 %v315
    %591 = vmatmul.f32.gmra.mxu0 %v308
    %v592 = vpop.f32.mrf.mxu0
    %v593 = vadd.f32 %v445, %v592
    %594 = vdwg.mxu0
    %595 = vmatpush.msra.mxu0 %v436
    %596 = vmatpush.msra.mxu0 %v428
    %597 = vmatpush.msra.mxu0 %v420
    %598 = vmatpush.msra.mxu0 %v412
    %599 = vmatpush.msra.mxu0 %v404
    %600 = vmatpush.msra.mxu0 %v396
    %601 = vmatpush.msra.mxu0 %v388
    %602 = vmatpush.msra.mxu0 %v380
    %603 = vmatpush.msra.mxu0 %v372
    %604 = vmatpush.msra.mxu0 %v364
    %605 = vmatpush.msra.mxu0 %v356
    %606 = vmatpush.msra.mxu0 %v348
    %607 = vmatpush.msra.mxu0 %v340
    %608 = vmatpush.msra.mxu0 %v332
    %609 = vmatpush.msra.mxu0 %v324
    %610 = vmatpush.msra.mxu0 %v316
    %611 = vmatmul.f32.gmra.mxu0 %v308
    %v612 = vpop.f32.mrf.mxu0
    %v613 = vadd.f32 %v446, %v612
    %614 = vdwg.mxu0
    %v615 = vmax.f32 %v473, 0.0
    %v616 = vmax.f32 %v493, 0.0
    %v617 = vmax.f32 %v513, 0.0
    %v618 = vmax.f32 %v533, 0.0
    %v619 = vmax.f32 %v553, 0.0
    %v620 = vmax.f32 %v573, 0.0
    %v621 = vmax.f32 %v593, 0.0
    %v622 = vmax.f32 %v613, 0.0
    %v623 = vld [vmem:[%s5] sm:$0xff]
    %v624 = vld [vmem:[%s5 + $0x8] sm:$0xff]
    %v625 = vld [vmem:[%s5 + $0x10] sm:$0xff]
    %v626 = vld [vmem:[%s5 + $0x18] sm:$0xff]
    %v627 = vld [vmem:[%s5 + $0x20] sm:$0xff]
    %v628 = vld [vmem:[%s5 + $0x28] sm:$0xff]
    %v629 = vld [vmem:[%s5 + $0x30] sm:$0xff]
    %v630 = vld [vmem:[%s5 + $0x38] sm:$0xff]
    %v631 = vld [vmem:[%s5 + $0x40] sm:$0xff]
    %v632 = vld [vmem:[%s5 + $0x48] sm:$0xff]
    %v633 = vld [vmem:[%s5 + $0x50] sm:$0xff]
    %v634 = vld [vmem:[%s5 + $0x58] sm:$0xff]
    %v635 = vld [vmem:[%s5 + $0x60] sm:$0xff]
    %v636 = vld [vmem:[%s5 + $0x68] sm:$0xff]
    %v637 = vld [vmem:[%s5 + $0x70] sm:$0xff]
    %v638 = vld [vmem:[%s5 + $0x78] sm:$0xff]
    %v639 = vld [vmem:[%s5 + $0x80] sm:$0xff]
    %v640 = vld [vmem:[%s5 + $0x88] sm:$0xff]
    %v641 = vld [vmem:[%s5 + $0x90] sm:$0xff]
    %v642 = vld [vmem:[%s5 + $0x98] sm:$0xff]
    %v643 = vld [vmem:[%s5 + $0xa0] sm:$0xff]
    %v644 = vld [vmem:[%s5 + $0xa8] sm:$0xff]
    %v645 = vld [vmem:[%s5 + $0xb0] sm:$0xff]
    %v646 = vld [vmem:[%s5 + $0xb8] sm:$0xff]
    %v647 = vld [vmem:[%s5 + $0xc0] sm:$0xff]
    %v648 = vld [vmem:[%s5 + $0xc8] sm:$0xff]
    %v649 = vld [vmem:[%s5 + $0xd0] sm:$0xff]
    %v650 = vld [vmem:[%s5 + $0xd8] sm:$0xff]
    %v651 = vld [vmem:[%s5 + $0xe0] sm:$0xff]
    %v652 = vld [vmem:[%s5 + $0xe8] sm:$0xff]
    %v653 = vld [vmem:[%s5 + $0xf0] sm:$0xff]
    %v654 = vld [vmem:[%s5 + $0xf8] sm:$0xff]
    %v655 = vld [vmem:[%s5 + $0x100] sm:$0xff]
    %v656 = vld [vmem:[%s5 + $0x108] sm:$0xff]
    %v657 = vld [vmem:[%s5 + $0x110] sm:$0xff]
    %v658 = vld [vmem:[%s5 + $0x118] sm:$0xff]
    %v659 = vld [vmem:[%s5 + $0x120] sm:$0xff]
    %v660 = vld [vmem:[%s5 + $0x128] sm:$0xff]
    %v661 = vld [vmem:[%s5 + $0x130] sm:$0xff]
    %v662 = vld [vmem:[%s5 + $0x138] sm:$0xff]
    %v663 = vld [vmem:[%s5 + $0x140] sm:$0xff]
    %v664 = vld [vmem:[%s5 + $0x148] sm:$0xff]
    %v665 = vld [vmem:[%s5 + $0x150] sm:$0xff]
    %v666 = vld [vmem:[%s5 + $0x158] sm:$0xff]
    %v667 = vld [vmem:[%s5 + $0x160] sm:$0xff]
    %v668 = vld [vmem:[%s5 + $0x168] sm:$0xff]
    %v669 = vld [vmem:[%s5 + $0x170] sm:$0xff]
    %v670 = vld [vmem:[%s5 + $0x178] sm:$0xff]
    %v671 = vld [vmem:[%s5 + $0x180] sm:$0xff]
    %v672 = vld [vmem:[%s5 + $0x188] sm:$0xff]
    %v673 = vld [vmem:[%s5 + $0x190] sm:$0xff]
    %v674 = vld [vmem:[%s5 + $0x198] sm:$0xff]
    %v675 = vld [vmem:[%s5 + $0x1a0] sm:$0xff]
    %v676 = vld [vmem:[%s5 + $0x1a8] sm:$0xff]
    %v677 = vld [vmem:[%s5 + $0x1b0] sm:$0xff]
    %v678 = vld [vmem:[%s5 + $0x1b8] sm:$0xff]
    %v679 = vld [vmem:[%s5 + $0x1c0] sm:$0xff]
    %v680 = vld [vmem:[%s5 + $0x1c8] sm:$0xff]
    %v681 = vld [vmem:[%s5 + $0x1d0] sm:$0xff]
    %v682 = vld [vmem:[%s5 + $0x1d8] sm:$0xff]
    %v683 = vld [vmem:[%s5 + $0x1e0] sm:$0xff]
    %v684 = vld [vmem:[%s5 + $0x1e8] sm:$0xff]
    %v685 = vld [vmem:[%s5 + $0x1f0] sm:$0xff]
    %v686 = vld [vmem:[%s5 + $0x1f8] sm:$0xff]
    %v687 = vld [vmem:[%s5 + $0x200] sm:$0xff]
    %v688 = vld [vmem:[%s5 + $0x208] sm:$0xff]
    %v689 = vld [vmem:[%s5 + $0x210] sm:$0xff]
    %v690 = vld [vmem:[%s5 + $0x218] sm:$0xff]
    %v691 = vld [vmem:[%s5 + $0x220] sm:$0xff]
    %v692 = vld [vmem:[%s5 + $0x228] sm:$0xff]
    %v693 = vld [vmem:[%s5 + $0x230] sm:$0xff]
    %v694 = vld [vmem:[%s5 + $0x238] sm:$0xff]
    %v695 = vld [vmem:[%s5 + $0x240] sm:$0xff]
    %v696 = vld [vmem:[%s5 + $0x248] sm:$0xff]
    %v697 = vld [vmem:[%s5 + $0x250] sm:$0xff]
    %v698 = vld [vmem:[%s5 + $0x258] sm:$0xff]
    %v699 = vld [vmem:[%s5 + $0x260] sm:$0xff]
    %v700 = vld [vmem:[%s5 + $0x268] sm:$0xff]
    %v701 = vld [vmem:[%s5 + $0x270] sm:$0xff]
    %v702 = vld [vmem:[%s5 + $0x278] sm:$0xff]
    %v703 = vld [vmem:[%s5 + $0x280] sm:$0xff]
    %v704 = vld [vmem:[%s5 + $0x288] sm:$0xff]
    %v705 = vld [vmem:[%s5 + $0x290] sm:$0xff]
    %v706 = vld [vmem:[%s5 + $0x298] sm:$0xff]
    %v707 = vld [vmem:[%s5 + $0x2a0] sm:$0xff]
    %v708 = vld [vmem:[%s5 + $0x2a8] sm:$0xff]
    %v709 = vld [vmem:[%s5 + $0x2b0] sm:$0xff]
    %v710 = vld [vmem:[%s5 + $0x2b8] sm:$0xff]
    %v711 = vld [vmem:[%s5 + $0x2c0] sm:$0xff]
    %v712 = vld [vmem:[%s5 + $0x2c8] sm:$0xff]
    %v713 = vld [vmem:[%s5 + $0x2d0] sm:$0xff]
    %v714 = vld [vmem:[%s5 + $0x2d8] sm:$0xff]
    %v715 = vld [vmem:[%s5 + $0x2e0] sm:$0xff]
    %v716 = vld [vmem:[%s5 + $0x2e8] sm:$0xff]
    %v717 = vld [vmem:[%s5 + $0x2f0] sm:$0xff]
    %v718 = vld [vmem:[%s5 + $0x2f8] sm:$0xff]
    %v719 = vld [vmem:[%s5 + $0x300] sm:$0xff]
    %v720 = vld [vmem:[%s5 + $0x308] sm:$0xff]
    %v721 = vld [vmem:[%s5 + $0x310] sm:$0xff]
    %v722 = vld [vmem:[%s5 + $0x318] sm:$0xff]
    %v723 = vld [vmem:[%s5 + $0x320] sm:$0xff]
    %v724 = vld [vmem:[%s5 + $0x328] sm:$0xff]
    %v725 = vld [vmem:[%s5 + $0x330] sm:$0xff]
    %v726 = vld [vmem:[%s5 + $0x338] sm:$0xff]
    %v727 = vld [vmem:[%s5 + $0x340] sm:$0xff]
    %v728 = vld [vmem:[%s5 + $0x348] sm:$0xff]
    %v729 = vld [vmem:[%s5 + $0x350] sm:$0xff]
    %v730 = vld [vmem:[%s5 + $0x358] sm:$0xff]
    %v731 = vld [vmem:[%s5 + $0x360] sm:$0xff]
    %v732 = vld [vmem:[%s5 + $0x368] sm:$0xff]
    %v733 = vld [vmem:[%s5 + $0x370] sm:$0xff]
    %v734 = vld [vmem:[%s5 + $0x378] sm:$0xff]
    %v735 = vld [vmem:[%s5 + $0x380] sm:$0xff]
    %v736 = vld [vmem:[%s5 + $0x388] sm:$0xff]
    %v737 = vld [vmem:[%s5 + $0x390] sm:$0xff]
    %v738 = vld [vmem:[%s5 + $0x398] sm:$0xff]
    %v739 = vld [vmem:[%s5 + $0x3a0] sm:$0xff]
    %v740 = vld [vmem:[%s5 + $0x3a8] sm:$0xff]
    %v741 = vld [vmem:[%s5 + $0x3b0] sm:$0xff]
    %v742 = vld [vmem:[%s5 + $0x3b8] sm:$0xff]
    %v743 = vld [vmem:[%s5 + $0x3c0] sm:$0xff]
    %v744 = vld [vmem:[%s5 + $0x3c8] sm:$0xff]
    %v745 = vld [vmem:[%s5 + $0x3d0] sm:$0xff]
    %v746 = vld [vmem:[%s5 + $0x3d8] sm:$0xff]
    %v747 = vld [vmem:[%s5 + $0x3e0] sm:$0xff]
    %v748 = vld [vmem:[%s5 + $0x3e8] sm:$0xff]
    %v749 = vld [vmem:[%s5 + $0x3f0] sm:$0xff]
    %v750 = vld [vmem:[%s5 + $0x3f8] sm:$0xff]
    %v751 = vld [vmem:[%s6] sm:$0x1]
    %v753 = vperm.slane %v751, 0
    %755 = vmatpush.msra.mxu0 %v638
    %756 = vmatpush.msra.mxu0 %v637
    %757 = vmatpush.msra.mxu0 %v636
    %758 = vmatpush.msra.mxu0 %v635
    %759 = vmatpush.msra.mxu0 %v634
    %760 = vmatpush.msra.mxu0 %v633
    %761 = vmatpush.msra.mxu0 %v632
    %762 = vmatpush.msra.mxu0 %v631
    %763 = vmatpush.msra.mxu0 %v630
    %764 = vmatpush.msra.mxu0 %v629
    %765 = vmatpush.msra.mxu0 %v628
    %766 = vmatpush.msra.mxu0 %v627
    %767 = vmatpush.msra.mxu0 %v626
    %768 = vmatpush.msra.mxu0 %v625
    %769 = vmatpush.msra.mxu0 %v624
    %770 = vmatpush.msra.mxu0 %v623
    %771 = vmatmul.f32.gmra.mxu0 %v615
    %v772 = vpop.f32.mrf.mxu0
    %v773 = vadd.f32 %v753, %v772
    %774 = vdwg.mxu0
    %775 = vmatpush.msra.mxu0 %v654
    %776 = vmatpush.msra.mxu0 %v653
    %777 = vmatpush.msra.mxu0 %v652
    %778 = vmatpush.msra.mxu0 %v651
    %779 = vmatpush.msra.mxu0 %v650
    %780 = vmatpush.msra.mxu0 %v649
    %781 = vmatpush.msra.mxu0 %v648
    %782 = vmatpush.msra.mxu0 %v647
    %783 = vmatpush.msra.mxu0 %v646
    %784 = vmatpush.msra.mxu0 %v645
    %785 = vmatpush.msra.mxu0 %v644
    %786 = vmatpush.msra.mxu0 %v643
    %787 = vmatpush.msra.mxu0 %v642
    %788 = vmatpush.msra.mxu0 %v641
    %789 = vmatpush.msra.mxu0 %v640
    %790 = vmatpush.msra.mxu0 %v639
    %791 = vmatmul.f32.gmra.mxu0 %v616
    %v792 = vpop.f32.mrf.mxu0
    %v793 = vadd.f32 %v773, %v792
    %794 = vdwg.mxu0
    %795 = vmatpush.msra.mxu0 %v670
    %796 = vmatpush.msra.mxu0 %v669
    %797 = vmatpush.msra.mxu0 %v668
    %798 = vmatpush.msra.mxu0 %v667
    %799 = vmatpush.msra.mxu0 %v666
    %800 = vmatpush.msra.mxu0 %v665
    %801 = vmatpush.msra.mxu0 %v664
    %802 = vmatpush.msra.mxu0 %v663
    %803 = vmatpush.msra.mxu0 %v662
    %804 = vmatpush.msra.mxu0 %v661
    %805 = vmatpush.msra.mxu0 %v660
    %806 = vmatpush.msra.mxu0 %v659
    %807 = vmatpush.msra.mxu0 %v658
    %808 = vmatpush.msra.mxu0 %v657
    %809 = vmatpush.msra.mxu0 %v656
    %810 = vmatpush.msra.mxu0 %v655
    %811 = vmatmul.f32.gmra.mxu0 %v617
    %v812 = vpop.f32.mrf.mxu0
    %v813 = vadd.f32 %v793, %v812
    %814 = vdwg.mxu0
    %815 = vmatpush.msra.mxu0 %v686
    %816 = vmatpush.msra.mxu0 %v685
    %817 = vmatpush.msra.mxu0 %v684
    %818 = vmatpush.msra.mxu0 %v683
    %819 = vmatpush.msra.mxu0 %v682
    %820 = vmatpush.msra.mxu0 %v681
    %821 = vmatpush.msra.mxu0 %v680
    %822 = vmatpush.msra.mxu0 %v679
    %823 = vmatpush.msra.mxu0 %v678
    %824 = vmatpush.msra.mxu0 %v677
    %825 = vmatpush.msra.mxu0 %v676
    %826 = vmatpush.msra.mxu0 %v675
    %827 = vmatpush.msra.mxu0 %v674
    %828 = vmatpush.msra.mxu0 %v673
    %829 = vmatpush.msra.mxu0 %v672
    %830 = vmatpush.msra.mxu0 %v671
    %831 = vmatmul.f32.gmra.mxu0 %v618
    %v832 = vpop.f32.mrf.mxu0
    %v833 = vadd.f32 %v813, %v832
    %834 = vdwg.mxu0
    %835 = vmatpush.msra.mxu0 %v702
    %836 = vmatpush.msra.mxu0 %v701
    %837 = vmatpush.msra.mxu0 %v700
    %838 = vmatpush.msra.mxu0 %v699
    %839 = vmatpush.msra.mxu0 %v698
    %840 = vmatpush.msra.mxu0 %v697
    %841 = vmatpush.msra.mxu0 %v696
    %842 = vmatpush.msra.mxu0 %v695
    %843 = vmatpush.msra.mxu0 %v694
    %844 = vmatpush.msra.mxu0 %v693
    %845 = vmatpush.msra.mxu0 %v692
    %846 = vmatpush.msra.mxu0 %v691
    %847 = vmatpush.msra.mxu0 %v690
    %848 = vmatpush.msra.mxu0 %v689
    %849 = vmatpush.msra.mxu0 %v688
    %850 = vmatpush.msra.mxu0 %v687
    %851 = vmatmul.f32.gmra.mxu0 %v619
    %v852 = vpop.f32.mrf.mxu0
    %v853 = vadd.f32 %v833, %v852
    %854 = vdwg.mxu0
    %855 = vmatpush.msra.mxu0 %v718
    %856 = vmatpush.msra.mxu0 %v717
    %857 = vmatpush.msra.mxu0 %v716
    %858 = vmatpush.msra.mxu0 %v715
    %859 = vmatpush.msra.mxu0 %v714
    %860 = vmatpush.msra.mxu0 %v713
    %861 = vmatpush.msra.mxu0 %v712
    %862 = vmatpush.msra.mxu0 %v711
    %863 = vmatpush.msra.mxu0 %v710
    %864 = vmatpush.msra.mxu0 %v709
    %865 = vmatpush.msra.mxu0 %v708
    %866 = vmatpush.msra.mxu0 %v707
    %867 = vmatpush.msra.mxu0 %v706
    %868 = vmatpush.msra.mxu0 %v705
    %869 = vmatpush.msra.mxu0 %v704
    %870 = vmatpush.msra.mxu0 %v703
    %871 = vmatmul.f32.gmra.mxu0 %v620
    %v872 = vpop.f32.mrf.mxu0
    %v873 = vadd.f32 %v853, %v872
    %874 = vdwg.mxu0
    %875 = vmatpush.msra.mxu0 %v734
    %876 = vmatpush.msra.mxu0 %v733
    %877 = vmatpush.msra.mxu0 %v732
    %878 = vmatpush.msra.mxu0 %v731
    %879 = vmatpush.msra.mxu0 %v730
    %880 = vmatpush.msra.mxu0 %v729
    %881 = vmatpush.msra.mxu0 %v728
    %882 = vmatpush.msra.mxu0 %v727
    %883 = vmatpush.msra.mxu0 %v726
    %884 = vmatpush.msra.mxu0 %v725
    %885 = vmatpush.msra.mxu0 %v724
    %886 = vmatpush.msra.mxu0 %v723
    %887 = vmatpush.msra.mxu0 %v722
    %888 = vmatpush.msra.mxu0 %v721
    %889 = vmatpush.msra.mxu0 %v720
    %890 = vmatpush.msra.mxu0 %v719
    %891 = vmatmul.f32.gmra.mxu0 %v621
    %v892 = vpop.f32.mrf.mxu0
    %v893 = vadd.f32 %v873, %v892
    %894 = vdwg.mxu0
    %895 = vmatpush.msra.mxu0 %v750
    %896 = vmatpush.msra.mxu0 %v749
    %897 = vmatpush.msra.mxu0 %v748
    %898 = vmatpush.msra.mxu0 %v747
    %899 = vmatpush.msra.mxu0 %v746
    %900 = vmatpush.msra.mxu0 %v745
    %901 = vmatpush.msra.mxu0 %v744
    %902 = vmatpush.msra.mxu0 %v743
    %903 = vmatpush.msra.mxu0 %v742
    %904 = vmatpush.msra.mxu0 %v741
    %905 = vmatpush.msra.mxu0 %v740
    %906 = vmatpush.msra.mxu0 %v739
    %907 = vmatpush.msra.mxu0 %v738
    %908 = vmatpush.msra.mxu0 %v737
    %909 = vmatpush.msra.mxu0 %v736
    %910 = vmatpush.msra.mxu0 %v735
    %911 = vmatmul.f32.gmra.mxu0 %v622
    %v912 = vpop.f32.mrf.mxu0
    %v913 = vadd.f32 %v893, %v912
    %914 = vdwg.mxu0
    %vm915 = vcmask 74752
    %v916 = vsel %vm915, %v913, -inf
    %v917 = vrot.slane %v916, 4
    %v918 = vmax.f32 %v916, %v917
    %v919 = vrot.slane %v918, 2
    %v920 = vmax.f32 %v918, %v919
    %v921 = vrot.slane %v920, 1
    %v922 = vmax.f32 %v920, %v921
    %v923 = vsub.f32 %v913, %v922
    %v924 = vmul.f32 %v923, 1.442695
    %v925 = vpow.pop %v924
    %v926 = vsel %vm915, %v925, 0.0
    %v927 = vrot.slane %v926, 4
    %v928 = vadd.f32 %v926, %v927
    %v929 = vrot.slane %v928, 2
    %v930 = vadd.f32 %v928, %v929
    %v931 = vrot.slane %v930, 1
    %v932 = vadd.f32 %v930, %v931
    %v933 = vrcp.pop %v932
    %v934 = vmul.f32 %v932, %v933
    %v935 = vsub.f32 1.0, %v934
    %v936 = vmul.f32 %v933, %v935
    %v937 = vadd.f32 %v933, %v936
    %vm938 = vweird.f32 %v932
    %vm939 = vweird.f32 %v933
    %vm940 = vmor %vm938, %vm939
    %v941 = vsel %vm940, %v933, %v937
    %v942 = vand.u32 2147483647, %v932
    %vm943 = vcmp.eq.f32.partialorder %v942, 8.507059e+37
    %v944 = vand.u32 %v932, 2147483648
    %v945 = vor.u32 1.1754944e-38, %v944
    %v946 = vsel %vm943, %v945, %v941
    %v947 = vmul.f32 %v925, %v946
    %948 = vst.msk [vmem:[#allocation5] sm:$0x3] %vm915, %v947
    // Predicated region
    $region34: #{inception_aux_forward.1} parent=1 // pred_check
      _
    $region35: #{inception_aux_forward.1} parent=1 // pred_check_branch
      %950 = sbr.rel (0) target = $region37
    $region36: #{inception_aux_forward.1} parent=1 // pred_region
      %952 = vsyncadd [#allocation4], 0
      %s954 = sshll.u32 [#allocation5], 4
      %s955 = int_to_ptr.vmem [resolvable:$true] %s954
      %s956 = sshll.u32 %s7, 4
      %s957 = int_to_ptr.hbm [resolvable:$true] %s956
      %959 = dma.vmem_to_hbm [thread:$0]  %s955, 32, %s957, [#allocation4]
    $region37: #{inception_aux_forward.1} parent=1 // pred_fallthru
      _
    // Predicated region
    $region38: #{inception_aux_forward.1} parent=1 // pred_check
      _
    $region39: #{inception_aux_forward.1} parent=1 // pred_check_branch
      %961 = sbr.rel (0) target = $region41
    $region40: #{inception_aux_forward.1} parent=1 // pred_region
      %963 = dma.done [#allocation4], 32
    $region41: #{inception_aux_forward.1} parent=1 // pred_fallthru
      _
    %964 = vsyncpa [#allocation3], 1
    %965 = vsyncpa [#allocation4], 1

</llo_original>
